<compile_context>
chip_gen: v7x
topology: tpu7x:2x2x1
jax: 0.10.0
libtpu: 0.0.40
codegen_flags: <defaults>
</compile_context>

<pallas_src>
import math

import jax
import jax.numpy as jnp
from jax.experimental import pallas as pl
from jax.experimental.pallas import tpu as pltpu


def _dws_conv_kernel(x_ref, w1_ref, b1_ref, wd_ref, bd_ref, w2_ref, b2_ref, o_ref):
    hidden, ins = w1_ref.shape
    outs = w2_ref.shape[0]
    L = x_ref.shape[-1]
    bt = x_ref.shape[0] // ins          # batches folded into this grid step

    x = x_ref[...]                       # (bt*ins, L) dense slab
    w1 = w1_ref[...]                     # (hidden, ins)
    b1 = b1_ref[...]                     # (hidden, 1)
    wd = wd_ref[...]                     # (hidden, 3)
    bd = bd_ref[...]                     # (hidden, 1)
    w2 = w2_ref[...]                     # (outs, hidden)
    b2 = b2_ref[...]                     # (outs, 1)

    # Lane-index masks for the depthwise zero padding (hoisted out of the loop).
    lane = jax.lax.broadcasted_iota(jnp.int32, (hidden, L), 1)
    first_lane = lane == 0
    last_lane = lane == (L - 1)

    # bt is a trace-time constant, so this Python loop is fully unrolled.
    out_rows = []
    for b in range(bt):
        # ---- pointwise expand Conv1d(ins, hidden, k=1):
        # K=ins is tiny -> unrolled VPU broadcast-FMAs instead of an MXU matmul.
        r0 = b * ins
        y1 = w1[:, 0:1] * x[r0:r0 + 1, :] + b1          # (hidden, L)
        for c in range(1, ins):
            y1 = y1 + w1[:, c:c + 1] * x[r0 + c:r0 + c + 1, :]

        # ---- depthwise Conv1d(hidden, hidden, k=3, pad=1, groups=hidden):
        # neighbors via XLU roll + lane mask (no concatenate temporaries).
        y_prev = jnp.where(first_lane, 0.0, pltpu.roll(y1, shift=1, axis=1))
        y_next = jnp.where(last_lane, 0.0, pltpu.roll(y1, shift=L - 1, axis=1))
        y2 = (wd[:, 0:1] * y_prev
              + wd[:, 1:2] * y1
              + wd[:, 2:3] * y_next
              + bd)

        # ---- pointwise project Conv1d(hidden, outs, k=1): K=hidden on the MXU.
        y3 = jnp.dot(w2, y2, preferred_element_type=jnp.float32) + b2
        out_rows.append(y3)

    out_blk = out_rows[0] if bt == 1 else jnp.concatenate(out_rows, axis=0)
    o_ref[...] = out_blk.astype(o_ref.dtype)             # dense (bt*outs, L) store


def _choose_batch_fold(N, ins, outs, L, hidden):
    """Pick how many batch elements to fold into one grid step."""
    # Smallest fold making both the x and out blocks sublane-dense (rows % 8 == 0).
    bt = max(8 // math.gcd(ins, 8), 8 // math.gcd(outs, 8))
    # Grow the fold to amortize per-step overhead, but keep >= 2 grid steps when
    # the batch allows (v7x: 2 TensorCores share the parallel grid axis) and stay
    # comfortably inside VMEM (budget sized for v7x's smaller 64 MiB VMEM).
    per_batch_bytes = 4 * L * (ins + outs + 4 * hidden)
    while (bt < 64
           and bt * 2 * per_batch_bytes <= (8 << 20)
           and pl.cdiv(N, bt * 2) >= 2):
        bt *= 2
    return bt


def dws_conv(x, w1, b1, wd, bd, w2, b2):
    """x: (N, ins, L) float32 -> (N, outs, L) float32."""
    N, ins, L = x.shape
    hidden = w1.shape[0]
    outs = w2.shape[0]

    bt = _choose_batch_fold(N, ins, outs, L, hidden)
    n_pad = pl.cdiv(N, bt) * bt
    if n_pad != N:
        x = jnp.pad(x, ((0, n_pad - N), (0, 0), (0, 0)))

    # Free contiguous reshapes: present sublane/lane-dense 2D slabs to Pallas.
    x2d = x.reshape(n_pad * ins, L)
    b1c = b1.reshape(hidden, 1)
    bdc = bd.reshape(hidden, 1)
    b2c = b2.reshape(outs, 1)

    out2d = pl.pallas_call(
        _dws_conv_kernel,
        out_shape=jax.ShapeDtypeStruct((n_pad * outs, L), jnp.float32),
        grid_spec=pltpu.PrefetchScalarGridSpec(
            num_scalar_prefetch=0,
            grid=(n_pad // bt,),
            in_specs=[
                pl.BlockSpec((bt * ins, L), lambda i: (i, 0)),   # x, bt batches/step
                pl.BlockSpec((hidden, ins), lambda i: (0, 0)),   # w1
                pl.BlockSpec((hidden, 1), lambda i: (0, 0)),     # b1
                pl.BlockSpec((hidden, 3), lambda i: (0, 0)),     # depthwise weights
                pl.BlockSpec((hidden, 1), lambda i: (0, 0)),     # depthwise bias
                pl.BlockSpec((outs, hidden), lambda i: (0, 0)),  # w2
                pl.BlockSpec((outs, 1), lambda i: (0, 0)),       # b2
            ],
            out_specs=pl.BlockSpec((bt * outs, L), lambda i: (i, 0)),
        ),
        compiler_params=pltpu.CompilerParams(
            dimension_semantics=("parallel",)),
    )(x2d, w1, b1c, wd, bdc, w2, b2c)

    out = out2d.reshape(n_pad, outs, L)
    return out[:N] if n_pad != N else out


def dws_conv_ref(x, w1, b1, wd, bd, w2, b2):
    """Pure-JAX reference matching PyTorch DwsConv.forward semantics."""
    y1 = jnp.einsum("hc,ncl->nhl", w1, x) + b1[None, :, None]
    yp = jnp.pad(y1, ((0, 0), (0, 0), (1, 1)))
    y2 = (wd[None, :, 0:1] * yp[:, :, :-2]
          + wd[None, :, 1:2] * yp[:, :, 1:-1]
          + wd[None, :, 2:3] * yp[:, :, 2:]
          + bd[None, :, None])
    return jnp.einsum("oh,nhl->nol", w2, y2) + b2[None, :, None]


if __name__ == "__main__":
    # Small shapes consistent with the module: DwsConv(ins=4, outs=4) -> hidden=32
    N, ins, outs, L = 2, 4, 4, 128
    hidden = 8 * outs

    key = jax.random.PRNGKey(0)
    kx, k1, k2, k3, k4, k5, k6 = jax.random.split(key, 7)

    x = jax.random.normal(kx, (N, ins, L), dtype=jnp.float32)

    # Deterministic parameter init (roughly PyTorch-scale uniform fan-in init).
    w1 = jax.random.uniform(k1, (hidden, ins), jnp.float32, -1.0, 1.0) / jnp.sqrt(ins)
    b1 = jax.random.uniform(k2, (hidden,), jnp.float32, -1.0, 1.0) / jnp.sqrt(ins)
    # depthwise weights: PyTorch shape (hidden, 1, 3) -> stored as (hidden, 3)
    wd = jax.random.uniform(k3, (hidden, 3), jnp.float32, -1.0, 1.0) / jnp.sqrt(3.0)
    bd = jax.random.uniform(k4, (hidden,), jnp.float32, -1.0, 1.0) / jnp.sqrt(3.0)
    w2 = jax.random.uniform(k5, (outs, hidden), jnp.float32, -1.0, 1.0) / jnp.sqrt(hidden)
    b2 = jax.random.uniform(k6, (outs,), jnp.float32, -1.0, 1.0) / jnp.sqrt(hidden)

    out = dws_conv(x, w1, b1, wd, bd, w2, b2)
    out = jax.block_until_ready(out)

    ref = dws_conv_ref(x, w1, b1, wd, bd, w2, b2)
    assert out.shape == (N, outs, L)
    assert jnp.allclose(out, ref, atol=1e-4, rtol=1e-4), "mismatch vs reference"

    print("KERNEL_OK")
</pallas_src>

<mosaic_0001>
module attributes {stable_mosaic.version = 11 : i64} {
  func.func @_dws_conv_kernel(%arg0: i32, %arg1: memref<8x128xf32, #tpu.memory_space<vmem>>, %arg2: memref<32x4xf32, #tpu.memory_space<vmem>>, %arg3: memref<32x1xf32, #tpu.memory_space<vmem>>, %arg4: memref<32x3xf32, #tpu.memory_space<vmem>>, %arg5: memref<32x1xf32, #tpu.memory_space<vmem>>, %arg6: memref<4x32xf32, #tpu.memory_space<vmem>>, %arg7: memref<4x1xf32, #tpu.memory_space<vmem>>, %arg8: memref<8x128xf32, #tpu.memory_space<vmem>>) attributes {dimension_semantics = [#tpu.dimension_semantics<parallel>], iteration_bounds = array<i64: 1>, scalar_prefetch = 0 : i64, scratch_operands = 0 : i64, tpu.core_type = #tpu.core_type<tc>, window_params = [{transform_indices = @transform_0, window_bounds = array<i64: 8, 128>}, {pipeline_mode = #tpu.pipeline_mode<synchronous>, transform_indices = @transform_1, window_bounds = array<i64: 32, 4>}, {pipeline_mode = #tpu.pipeline_mode<synchronous>, transform_indices = @transform_2, window_bounds = array<i64: 32, 1>}, {pipeline_mode = #tpu.pipeline_mode<synchronous>, transform_indices = @transform_3, window_bounds = array<i64: 32, 3>}, {pipeline_mode = #tpu.pipeline_mode<synchronous>, transform_indices = @transform_4, window_bounds = array<i64: 32, 1>}, {pipeline_mode = #tpu.pipeline_mode<synchronous>, transform_indices = @transform_5, window_bounds = array<i64: 4, 32>}, {pipeline_mode = #tpu.pipeline_mode<synchronous>, transform_indices = @transform_6, window_bounds = array<i64: 4, 1>}, {transform_indices = @transform_7, window_bounds = array<i64: 8, 128>}]} {
    %c0 = arith.constant 0 : index
    %c0_0 = arith.constant 0 : index
    %0 = vector.load %arg1[%c0, %c0_0] : memref<8x128xf32, #tpu.memory_space<vmem>>, vector<8x128xf32>
    %c0_1 = arith.constant 0 : index
    %c0_2 = arith.constant 0 : index
    %1 = vector.load %arg2[%c0_1, %c0_2] : memref<32x4xf32, #tpu.memory_space<vmem>>, vector<32x4xf32>
    %c0_3 = arith.constant 0 : index
    %c0_4 = arith.constant 0 : index
    %2 = vector.load %arg3[%c0_3, %c0_4] : memref<32x1xf32, #tpu.memory_space<vmem>>, vector<32x1xf32>
    %c0_5 = arith.constant 0 : index
    %c0_6 = arith.constant 0 : index
    %3 = vector.load %arg4[%c0_5, %c0_6] : memref<32x3xf32, #tpu.memory_space<vmem>>, vector<32x3xf32>
    %c0_7 = arith.constant 0 : index
    %c0_8 = arith.constant 0 : index
    %4 = vector.load %arg5[%c0_7, %c0_8] : memref<32x1xf32, #tpu.memory_space<vmem>>, vector<32x1xf32>
    %c0_9 = arith.constant 0 : index
    %c0_10 = arith.constant 0 : index
    %5 = vector.load %arg6[%c0_9, %c0_10] : memref<4x32xf32, #tpu.memory_space<vmem>>, vector<4x32xf32>
    %c0_11 = arith.constant 0 : index
    %c0_12 = arith.constant 0 : index
    %6 = vector.load %arg7[%c0_11, %c0_12] : memref<4x1xf32, #tpu.memory_space<vmem>>, vector<4x1xf32>
    %7 = tpu.iota {dimensions = array<i32: 1>} : vector<32x128xi32>
    %c0_i32 = arith.constant 0 : i32
    %8 = vector.broadcast %c0_i32 : i32 to vector<32x128xi32>
    %9 = arith.cmpi eq, %7, %8 : vector<32x128xi32>
    %c127_i32 = arith.constant 127 : i32
    %10 = vector.broadcast %c127_i32 : i32 to vector<32x128xi32>
    %11 = arith.cmpi eq, %7, %10 : vector<32x128xi32>
    %12 = vector.extract_strided_slice %1 {offsets = [0, 0], sizes = [32, 1], strides = [1, 1]} : vector<32x4xf32> to vector<32x1xf32>
    %13 = vector.extract_strided_slice %0 {offsets = [0, 0], sizes = [1, 128], strides = [1, 1]} : vector<8x128xf32> to vector<1x128xf32>
    %14 = vector.broadcast %12 : vector<32x1xf32> to vector<32x128xf32>
    %15 = vector.broadcast %13 : vector<1x128xf32> to vector<32x128xf32>
    %16 = arith.mulf %14, %15 : vector<32x128xf32>
    %17 = vector.broadcast %2 : vector<32x1xf32> to vector<32x128xf32>
    %18 = arith.addf %16, %17 : vector<32x128xf32>
    %19 = vector.extract_strided_slice %1 {offsets = [0, 1], sizes = [32, 1], strides = [1, 1]} : vector<32x4xf32> to vector<32x1xf32>
    %20 = vector.extract_strided_slice %0 {offsets = [1, 0], sizes = [1, 128], strides = [1, 1]} : vector<8x128xf32> to vector<1x128xf32>
    %21 = vector.broadcast %19 : vector<32x1xf32> to vector<32x128xf32>
    %22 = vector.broadcast %20 : vector<1x128xf32> to vector<32x128xf32>
    %23 = arith.mulf %21, %22 : vector<32x128xf32>
    %24 = arith.addf %18, %23 : vector<32x128xf32>
    %25 = vector.extract_strided_slice %1 {offsets = [0, 2], sizes = [32, 1], strides = [1, 1]} : vector<32x4xf32> to vector<32x1xf32>
    %26 = vector.extract_strided_slice %0 {offsets = [2, 0], sizes = [1, 128], strides = [1, 1]} : vector<8x128xf32> to vector<1x128xf32>
    %27 = vector.broadcast %25 : vector<32x1xf32> to vector<32x128xf32>
    %28 = vector.broadcast %26 : vector<1x128xf32> to vector<32x128xf32>
    %29 = arith.mulf %27, %28 : vector<32x128xf32>
    %30 = arith.addf %24, %29 : vector<32x128xf32>
    %31 = vector.extract_strided_slice %1 {offsets = [0, 3], sizes = [32, 1], strides = [1, 1]} : vector<32x4xf32> to vector<32x1xf32>
    %32 = vector.extract_strided_slice %0 {offsets = [3, 0], sizes = [1, 128], strides = [1, 1]} : vector<8x128xf32> to vector<1x128xf32>
    %33 = vector.broadcast %31 : vector<32x1xf32> to vector<32x128xf32>
    %34 = vector.broadcast %32 : vector<1x128xf32> to vector<32x128xf32>
    %35 = arith.mulf %33, %34 : vector<32x128xf32>
    %36 = arith.addf %30, %35 : vector<32x128xf32>
    %c1_i32 = arith.constant 1 : i32
    %37 = tpu.dynamic_rotate %36 by %c1_i32 dim 1 : vector<32x128xf32>, i32 -> vector<32x128xf32>
    %cst = arith.constant 0.000000e+00 : f32
    %38 = vector.broadcast %cst : f32 to vector<32x128xf32>
    %39 = arith.select %9, %38, %37 : vector<32x128xi1>, vector<32x128xf32>
    %c127_i32_13 = arith.constant 127 : i32
    %40 = tpu.dynamic_rotate %36 by %c127_i32_13 dim 1 : vector<32x128xf32>, i32 -> vector<32x128xf32>
    %cst_14 = arith.constant 0.000000e+00 : f32
    %41 = vector.broadcast %cst_14 : f32 to vector<32x128xf32>
    %42 = arith.select %11, %41, %40 : vector<32x128xi1>, vector<32x128xf32>
    %43 = vector.extract_strided_slice %3 {offsets = [0, 0], sizes = [32, 1], strides = [1, 1]} : vector<32x3xf32> to vector<32x1xf32>
    %44 = vector.broadcast %43 : vector<32x1xf32> to vector<32x128xf32>
    %45 = arith.mulf %44, %39 : vector<32x128xf32>
    %46 = vector.extract_strided_slice %3 {offsets = [0, 1], sizes = [32, 1], strides = [1, 1]} : vector<32x3xf32> to vector<32x1xf32>
    %47 = vector.broadcast %46 : vector<32x1xf32> to vector<32x128xf32>
    %48 = arith.mulf %47, %36 : vector<32x128xf32>
    %49 = arith.addf %45, %48 : vector<32x128xf32>
    %50 = vector.extract_strided_slice %3 {offsets = [0, 2], sizes = [32, 1], strides = [1, 1]} : vector<32x3xf32> to vector<32x1xf32>
    %51 = vector.broadcast %50 : vector<32x1xf32> to vector<32x128xf32>
    %52 = arith.mulf %51, %42 : vector<32x128xf32>
    %53 = arith.addf %49, %52 : vector<32x128xf32>
    %54 = vector.broadcast %4 : vector<32x1xf32> to vector<32x128xf32>
    %55 = arith.addf %53, %54 : vector<32x128xf32>
    %cst_15 = arith.constant dense<0.000000e+00> : vector<4x128xf32>
    %56 = tpu.matmul %5, %55, %cst_15 {dimension_numbers = #tpu.dot_dimension_numbers<[1], [0], [0], [1], [0, 0, 1, 1], [], []>} : vector<4x32xf32>, vector<32x128xf32>, vector<4x128xf32> -> vector<4x128xf32>
    %57 = vector.broadcast %6 : vector<4x1xf32> to vector<4x128xf32>
    %58 = arith.addf %56, %57 : vector<4x128xf32>
    %59 = vector.extract_strided_slice %1 {offsets = [0, 0], sizes = [32, 1], strides = [1, 1]} : vector<32x4xf32> to vector<32x1xf32>
    %60 = vector.extract_strided_slice %0 {offsets = [4, 0], sizes = [1, 128], strides = [1, 1]} : vector<8x128xf32> to vector<1x128xf32>
    %61 = vector.broadcast %59 : vector<32x1xf32> to vector<32x128xf32>
    %62 = vector.broadcast %60 : vector<1x128xf32> to vector<32x128xf32>
    %63 = arith.mulf %61, %62 : vector<32x128xf32>
    %64 = vector.broadcast %2 : vector<32x1xf32> to vector<32x128xf32>
    %65 = arith.addf %63, %64 : vector<32x128xf32>
    %66 = vector.extract_strided_slice %1 {offsets = [0, 1], sizes = [32, 1], strides = [1, 1]} : vector<32x4xf32> to vector<32x1xf32>
    %67 = vector.extract_strided_slice %0 {offsets = [5, 0], sizes = [1, 128], strides = [1, 1]} : vector<8x128xf32> to vector<1x128xf32>
    %68 = vector.broadcast %66 : vector<32x1xf32> to vector<32x128xf32>
    %69 = vector.broadcast %67 : vector<1x128xf32> to vector<32x128xf32>
    %70 = arith.mulf %68, %69 : vector<32x128xf32>
    %71 = arith.addf %65, %70 : vector<32x128xf32>
    %72 = vector.extract_strided_slice %1 {offsets = [0, 2], sizes = [32, 1], strides = [1, 1]} : vector<32x4xf32> to vector<32x1xf32>
    %73 = vector.extract_strided_slice %0 {offsets = [6, 0], sizes = [1, 128], strides = [1, 1]} : vector<8x128xf32> to vector<1x128xf32>
    %74 = vector.broadcast %72 : vector<32x1xf32> to vector<32x128xf32>
    %75 = vector.broadcast %73 : vector<1x128xf32> to vector<32x128xf32>
    %76 = arith.mulf %74, %75 : vector<32x128xf32>
    %77 = arith.addf %71, %76 : vector<32x128xf32>
    %78 = vector.extract_strided_slice %1 {offsets = [0, 3], sizes = [32, 1], strides = [1, 1]} : vector<32x4xf32> to vector<32x1xf32>
    %79 = vector.extract_strided_slice %0 {offsets = [7, 0], sizes = [1, 128], strides = [1, 1]} : vector<8x128xf32> to vector<1x128xf32>
    %80 = vector.broadcast %78 : vector<32x1xf32> to vector<32x128xf32>
    %81 = vector.broadcast %79 : vector<1x128xf32> to vector<32x128xf32>
    %82 = arith.mulf %80, %81 : vector<32x128xf32>
    %83 = arith.addf %77, %82 : vector<32x128xf32>
    %c1_i32_16 = arith.constant 1 : i32
    %84 = tpu.dynamic_rotate %83 by %c1_i32_16 dim 1 : vector<32x128xf32>, i32 -> vector<32x128xf32>
    %cst_17 = arith.constant 0.000000e+00 : f32
    %85 = vector.broadcast %cst_17 : f32 to vector<32x128xf32>
    %86 = arith.select %9, %85, %84 : vector<32x128xi1>, vector<32x128xf32>
    %c127_i32_18 = arith.constant 127 : i32
    %87 = tpu.dynamic_rotate %83 by %c127_i32_18 dim 1 : vector<32x128xf32>, i32 -> vector<32x128xf32>
    %cst_19 = arith.constant 0.000000e+00 : f32
    %88 = vector.broadcast %cst_19 : f32 to vector<32x128xf32>
    %89 = arith.select %11, %88, %87 : vector<32x128xi1>, vector<32x128xf32>
    %90 = vector.extract_strided_slice %3 {offsets = [0, 0], sizes = [32, 1], strides = [1, 1]} : vector<32x3xf32> to vector<32x1xf32>
    %91 = vector.broadcast %90 : vector<32x1xf32> to vector<32x128xf32>
    %92 = arith.mulf %91, %86 : vector<32x128xf32>
    %93 = vector.extract_strided_slice %3 {offsets = [0, 1], sizes = [32, 1], strides = [1, 1]} : vector<32x3xf32> to vector<32x1xf32>
    %94 = vector.broadcast %93 : vector<32x1xf32> to vector<32x128xf32>
    %95 = arith.mulf %94, %83 : vector<32x128xf32>
    %96 = arith.addf %92, %95 : vector<32x128xf32>
    %97 = vector.extract_strided_slice %3 {offsets = [0, 2], sizes = [32, 1], strides = [1, 1]} : vector<32x3xf32> to vector<32x1xf32>
    %98 = vector.broadcast %97 : vector<32x1xf32> to vector<32x128xf32>
    %99 = arith.mulf %98, %89 : vector<32x128xf32>
    %100 = arith.addf %96, %99 : vector<32x128xf32>
    %101 = vector.broadcast %4 : vector<32x1xf32> to vector<32x128xf32>
    %102 = arith.addf %100, %101 : vector<32x128xf32>
    %cst_20 = arith.constant dense<0.000000e+00> : vector<4x128xf32>
    %103 = tpu.matmul %5, %102, %cst_20 {dimension_numbers = #tpu.dot_dimension_numbers<[1], [0], [0], [1], [0, 0, 1, 1], [], []>} : vector<4x32xf32>, vector<32x128xf32>, vector<4x128xf32> -> vector<4x128xf32>
    %104 = vector.broadcast %6 : vector<4x1xf32> to vector<4x128xf32>
    %105 = arith.addf %103, %104 : vector<4x128xf32>
    %106 = tpu.concatenate %58, %105 in 0 : vector<4x128xf32>, vector<4x128xf32> -> vector<8x128xf32>
    %c0_21 = arith.constant 0 : index
    %c0_22 = arith.constant 0 : index
    %107 = vector.load %arg8[%c0_21, %c0_22] : memref<8x128xf32, #tpu.memory_space<vmem>>, vector<8x128xf32>
    tpu.vector_store %arg8[%c0_21, %c0_22], %106 {strides = array<i32>} : memref<8x128xf32, #tpu.memory_space<vmem>>, vector<8x128xf32>,
    return
  }
  func.func @transform_0(%arg0: i32) -> (i32, i32) {
    %c0_i32 = arith.constant 0 : i32
    %c0_i32_0 = arith.constant 0 : i32
    return %arg0, %c0_i32 : i32, i32
  }
  func.func @transform_1(%arg0: i32) -> (i32, i32) {
    %c0_i32 = arith.constant 0 : i32
    %c0_i32_0 = arith.constant 0 : i32
    %c0_i32_1 = arith.constant 0 : i32
    return %c0_i32, %c0_i32_0 : i32, i32
  }
  func.func @transform_2(%arg0: i32) -> (i32, i32) {
    %c0_i32 = arith.constant 0 : i32
    %c0_i32_0 = arith.constant 0 : i32
    %c0_i32_1 = arith.constant 0 : i32
    return %c0_i32, %c0_i32_0 : i32, i32
  }
  func.func @transform_3(%arg0: i32) -> (i32, i32) {
    %c0_i32 = arith.constant 0 : i32
    %c0_i32_0 = arith.constant 0 : i32
    %c0_i32_1 = arith.constant 0 : i32
    return %c0_i32, %c0_i32_0 : i32, i32
  }
  func.func @transform_4(%arg0: i32) -> (i32, i32) {
    %c0_i32 = arith.constant 0 : i32
    %c0_i32_0 = arith.constant 0 : i32
    %c0_i32_1 = arith.constant 0 : i32
    return %c0_i32, %c0_i32_0 : i32, i32
  }
  func.func @transform_5(%arg0: i32) -> (i32, i32) {
    %c0_i32 = arith.constant 0 : i32
    %c0_i32_0 = arith.constant 0 : i32
    %c0_i32_1 = arith.constant 0 : i32
    return %c0_i32, %c0_i32_0 : i32, i32
  }
  func.func @transform_6(%arg0: i32) -> (i32, i32) {
    %c0_i32 = arith.constant 0 : i32
    %c0_i32_0 = arith.constant 0 : i32
    %c0_i32_1 = arith.constant 0 : i32
    return %c0_i32, %c0_i32_0 : i32, i32
  }
  func.func @transform_7(%arg0: i32) -> (i32, i32) {
    %c0_i32 = arith.constant 0 : i32
    %c0_i32_0 = arith.constant 0 : i32
    return %arg0, %c0_i32 : i32, i32
  }
}

</mosaic_0001>

<llo_original>
// kernel: tpu_custom_call.1
$region0: #{tpu_custom_call.1}
  #allocation0 [shape = 'u32[]', space=smem, size = 0x4, offset = 0x4, fixed_abs, tag = 'smem constant byte address 0x4 - core index']
  #allocation1 [shape = 'u32[144,128]{1,0:T(1,128)}', space=vmem, size = 0x12000, scoped, tag = 'internal scratch']
  %s0 = inlined_call_operand.vmem [shape: f32[8,128], index: 0, kind: input, shape index: {}]
  %s1 = inlined_call_operand.vmem [shape: f32[32,4], index: 1, kind: input, shape index: {}]
  %s2 = inlined_call_operand.vmem [shape: f32[32,1], index: 2, kind: input, shape index: {}]
  %s3 = inlined_call_operand.vmem [shape: f32[32,3], index: 3, kind: input, shape index: {}]
  %s4 = inlined_call_operand.vmem [shape: f32[32,1], index: 4, kind: input, shape index: {}]
  %s5 = inlined_call_operand.vmem [shape: f32[4,32], index: 5, kind: input, shape index: {}]
  %s6 = inlined_call_operand.vmem [shape: f32[4,1], index: 6, kind: input, shape index: {}]
  %s7 = inlined_call_operand.hbm [shape: f32[8,128], index: 7, kind: output, shape index: {}]
  %s8 = sld [smem:[#allocation0]]
  $region38: #{tpu_custom_call.1} parent=0
    _
  %s10 = ssub.s32 1, %s8
  %s11 = scalar_select 0, %s10, %s8
  $region1: #{tpu_custom_call.1} parent=0
    #allocation2 [shape = 'u8[4096]{0}', space=vmem, size = 0x1000, scoped, tag = 'output window, operand 0, single buffered']
    #allocation3 [shape = 's32[1]{0}', space=sflag, size = 0x4, scoped, tag = 'scoped memory for tpu_custom_call.1']
    %12 = vsyncpa [#allocation3], 0
    // Predicated region
    $region2: #{tpu_custom_call.1} parent=1 // pred_check
      _
    $region3: #{tpu_custom_call.1} parent=1 // pred_check_branch
      %14 = sbr.rel (0) target = $region5
    $region4: #{tpu_custom_call.1} parent=1 // pred_region
      _
    $region5: #{tpu_custom_call.1} parent=1 // pred_fallthru
      _
    // Predicated region
    $region6: #{tpu_custom_call.1} parent=1 // pred_check
      _
    $region7: #{tpu_custom_call.1} parent=1 // pred_check_branch
      %16 = sbr.rel (0) target = $region9
    $region8: #{tpu_custom_call.1} parent=1 // pred_region
      _
    $region9: #{tpu_custom_call.1} parent=1 // pred_fallthru
      _
    // Predicated region
    $region10: #{tpu_custom_call.1} parent=1 // pred_check
      _
    $region11: #{tpu_custom_call.1} parent=1 // pred_check_branch
      %18 = sbr.rel (0) target = $region13
    $region12: #{tpu_custom_call.1} parent=1 // pred_region
      _
    $region13: #{tpu_custom_call.1} parent=1 // pred_fallthru
      _
    // Predicated region
    $region14: #{tpu_custom_call.1} parent=1 // pred_check
      _
    $region15: #{tpu_custom_call.1} parent=1 // pred_check_branch
      %20 = sbr.rel (0) target = $region17
    $region16: #{tpu_custom_call.1} parent=1 // pred_region
      _
    $region17: #{tpu_custom_call.1} parent=1 // pred_fallthru
      _
    // Predicated region
    $region18: #{tpu_custom_call.1} parent=1 // pred_check
      _
    $region19: #{tpu_custom_call.1} parent=1 // pred_check_branch
      %22 = sbr.rel (0) target = $region21
    $region20: #{tpu_custom_call.1} parent=1 // pred_region
      _
    $region21: #{tpu_custom_call.1} parent=1 // pred_fallthru
      _
    // Predicated region
    $region22: #{tpu_custom_call.1} parent=1 // pred_check
      _
    $region23: #{tpu_custom_call.1} parent=1 // pred_check_branch
      %24 = sbr.rel (0) target = $region25
    $region24: #{tpu_custom_call.1} parent=1 // pred_region
      _
    $region25: #{tpu_custom_call.1} parent=1 // pred_fallthru
      _
    // Predicated region
    $region26: #{tpu_custom_call.1} parent=1 // pred_check
      _
    $region27: #{tpu_custom_call.1} parent=1 // pred_check_branch
      %26 = sbr.rel (0) target = $region29
    $region28: #{tpu_custom_call.1} parent=1 // pred_region
      _
    $region29: #{tpu_custom_call.1} parent=1 // pred_fallthru
      _
    %v27 = vld [vmem:[%s0] sm:$0xff]
    %v28 = vld [vmem:[%s1] sm:$0xff]
    %v29 = vld [vmem:[%s1 + $0x8] sm:$0xff]
    %v30 = vld [vmem:[%s1 + $0x10] sm:$0xff]
    %v31 = vld [vmem:[%s1 + $0x18] sm:$0xff]
    %v32 = vld [vmem:[%s2] sm:$0xff]
    %v33 = vld [vmem:[%s2 + $0x8] sm:$0xff]
    %v34 = vld [vmem:[%s2 + $0x10] sm:$0xff]
    %v35 = vld [vmem:[%s2 + $0x18] sm:$0xff]
    %v36 = vld [vmem:[%s3] sm:$0xff]
    %v37 = vld [vmem:[%s3 + $0x8] sm:$0xff]
    %v38 = vld [vmem:[%s3 + $0x10] sm:$0xff]
    %v39 = vld [vmem:[%s3 + $0x18] sm:$0xff]
    %v40 = vld [vmem:[%s4] sm:$0xff]
    %v41 = vld [vmem:[%s4 + $0x8] sm:$0xff]
    %v42 = vld [vmem:[%s4 + $0x10] sm:$0xff]
    %v43 = vld [vmem:[%s4 + $0x18] sm:$0xff]
    %v44 = vld [vmem:[%s5] sm:$0xf]
    %v45 = vld [vmem:[%s6] sm:$0xf]
    %v46 = vlaneseq
    %v47 = vand.u32 %v46, 127
    %vm48 = vcmp.eq.s32.totalorder %v47, 0
    %vm49 = vcmp.eq.s32.totalorder %v47, 127
    %51 = vset.pattern.permute.xlu0 0
    %52 = vperm.xlu0 %51, %v28
    %v53 = vpop.permute.xlu0 %52
    %56 = vset.pattern.permute.xlu0 0
    %57 = vperm.xlu0 %56, %v29
    %v58 = vpop.permute.xlu0 %57
    %61 = vset.pattern.permute.xlu0 0
    %62 = vperm.xlu0 %61, %v30
    %v63 = vpop.permute.xlu0 %62
    %66 = vset.pattern.permute.xlu0 0
    %67 = vperm.xlu0 %66, %v31
    %v68 = vpop.permute.xlu0 %67
    %v70 = vlaneseq
    %v71 = vshrl.u32 %v70, 7
    %v72 = vsub.s32 0, %v71
    %v73 = vrot.slane %v27, %v72
    %v74 = vmul.f32 %v53, %v73
    %v75 = vmul.f32 %v58, %v73
    %v76 = vmul.f32 %v63, %v73
    %v77 = vmul.f32 %v68, %v73
    %79 = vset.pattern.permute.xlu0 0
    %80 = vperm.xlu0 %79, %v32
    %v81 = vpop.permute.xlu0 %80
    %84 = vset.pattern.permute.xlu0 0
    %85 = vperm.xlu0 %84, %v33
    %v86 = vpop.permute.xlu0 %85
    %89 = vset.pattern.permute.xlu0 0
    %90 = vperm.xlu0 %89, %v34
    %v91 = vpop.permute.xlu0 %90
    %94 = vset.pattern.permute.xlu0 0
    %95 = vperm.xlu0 %94, %v35
    %v96 = vpop.permute.xlu0 %95
    %v98 = vadd.f32 %v74, %v81
    %v99 = vadd.f32 %v75, %v86
    %v100 = vadd.f32 %v76, %v91
    %v101 = vadd.f32 %v77, %v96
    %102 = vset.pattern.permute.xlu0 1
    %103 = vperm.xlu0 %102, %v28
    %v104 = vpop.permute.xlu0 %103
    %106 = vset.pattern.permute.xlu0 1
    %107 = vperm.xlu0 %106, %v29
    %v108 = vpop.permute.xlu0 %107
    %110 = vset.pattern.permute.xlu0 1
    %111 = vperm.xlu0 %110, %v30
    %v112 = vpop.permute.xlu0 %111
    %114 = vset.pattern.permute.xlu0 1
    %115 = vperm.xlu0 %114, %v31
    %v116 = vpop.permute.xlu0 %115
    %v118 = vlaneseq
    %v119 = vshrl.u32 %v118, 7
    %v120 = vsub.s32 1, %v119
    %v121 = vrot.slane %v27, %v120
    %v122 = vmul.f32 %v104, %v121
    %v123 = vmul.f32 %v108, %v121
    %v124 = vmul.f32 %v112, %v121
    %v125 = vmul.f32 %v116, %v121
    %v126 = vadd.f32 %v98, %v122
    %v127 = vadd.f32 %v99, %v123
    %v128 = vadd.f32 %v100, %v124
    %v129 = vadd.f32 %v101, %v125
    %130 = vset.pattern.permute.xlu0 2
    %131 = vperm.xlu0 %130, %v28
    %v132 = vpop.permute.xlu0 %131
    %134 = vset.pattern.permute.xlu0 2
    %135 = vperm.xlu0 %134, %v29
    %v136 = vpop.permute.xlu0 %135
    %138 = vset.pattern.permute.xlu0 2
    %139 = vperm.xlu0 %138, %v30
    %v140 = vpop.permute.xlu0 %139
    %142 = vset.pattern.permute.xlu0 2
    %143 = vperm.xlu0 %142, %v31
    %v144 = vpop.permute.xlu0 %143
    %v146 = vlaneseq
    %v147 = vshrl.u32 %v146, 7
    %v148 = vsub.s32 2, %v147
    %v149 = vrot.slane %v27, %v148
    %v150 = vmul.f32 %v132, %v149
    %v151 = vmul.f32 %v136, %v149
    %v152 = vmul.f32 %v140, %v149
    %v153 = vmul.f32 %v144, %v149
    %v154 = vadd.f32 %v126, %v150
    %v155 = vadd.f32 %v127, %v151
    %v156 = vadd.f32 %v128, %v152
    %v157 = vadd.f32 %v129, %v153
    %158 = vset.pattern.permute.xlu0 3
    %159 = vperm.xlu0 %158, %v28
    %v160 = vpop.permute.xlu0 %159
    %162 = vset.pattern.permute.xlu0 3
    %163 = vperm.xlu0 %162, %v29
    %v164 = vpop.permute.xlu0 %163
    %166 = vset.pattern.permute.xlu0 3
    %167 = vperm.xlu0 %166, %v30
    %v168 = vpop.permute.xlu0 %167
    %170 = vset.pattern.permute.xlu0 3
    %171 = vperm.xlu0 %170, %v31
    %v172 = vpop.permute.xlu0 %171
    %v174 = vlaneseq
    %v175 = vshrl.u32 %v174, 7
    %v176 = vsub.s32 3, %v175
    %v177 = vrot.slane %v27, %v176
    %v178 = vmul.f32 %v160, %v177
    %v179 = vmul.f32 %v164, %v177
    %v180 = vmul.f32 %v168, %v177
    %v181 = vmul.f32 %v172, %v177
    %v182 = vadd.f32 %v154, %v178
    %v183 = vadd.f32 %v155, %v179
    %v184 = vadd.f32 %v156, %v180
    %v185 = vadd.f32 %v157, %v181
    %186 = vrot.lane.b32.xlu0 %v182, 1
    %v187 = vpop.permute.xlu0 %186
    %188 = vrot.lane.b32.xlu0 %v183, 1
    %v189 = vpop.permute.xlu0 %188
    %190 = vrot.lane.b32.xlu0 %v184, 1
    %v191 = vpop.permute.xlu0 %190
    %192 = vrot.lane.b32.xlu0 %v185, 1
    %v193 = vpop.permute.xlu0 %192
    %v194 = vsel %vm48, 0.0, %v187
    %v195 = vsel %vm48, 0.0, %v189
    %v196 = vsel %vm48, 0.0, %v191
    %v197 = vsel %vm48, 0.0, %v193
    %198 = vrot.lane.b32.xlu0 %v182, 127
    %v199 = vpop.permute.xlu0 %198
    %200 = vrot.lane.b32.xlu0 %v183, 127
    %v201 = vpop.permute.xlu0 %200
    %202 = vrot.lane.b32.xlu0 %v184, 127
    %v203 = vpop.permute.xlu0 %202
    %204 = vrot.lane.b32.xlu0 %v185, 127
    %v205 = vpop.permute.xlu0 %204
    %v206 = vsel %vm49, 0.0, %v199
    %v207 = vsel %vm49, 0.0, %v201
    %v208 = vsel %vm49, 0.0, %v203
    %v209 = vsel %vm49, 0.0, %v205
    %211 = vset.pattern.permute.xlu0 0
    %212 = vperm.xlu0 %211, %v36
    %v213 = vpop.permute.xlu0 %212
    %216 = vset.pattern.permute.xlu0 0
    %217 = vperm.xlu0 %216, %v37
    %v218 = vpop.permute.xlu0 %217
    %221 = vset.pattern.permute.xlu0 0
    %222 = vperm.xlu0 %221, %v38
    %v223 = vpop.permute.xlu0 %222
    %226 = vset.pattern.permute.xlu0 0
    %227 = vperm.xlu0 %226, %v39
    %v228 = vpop.permute.xlu0 %227
    %v230 = vmul.f32 %v213, %v194
    %v231 = vmul.f32 %v218, %v195
    %v232 = vmul.f32 %v223, %v196
    %v233 = vmul.f32 %v228, %v197
    %234 = vset.pattern.permute.xlu0 1
    %235 = vperm.xlu0 %234, %v36
    %v236 = vpop.permute.xlu0 %235
    %238 = vset.pattern.permute.xlu0 1
    %239 = vperm.xlu0 %238, %v37
    %v240 = vpop.permute.xlu0 %239
    %242 = vset.pattern.permute.xlu0 1
    %243 = vperm.xlu0 %242, %v38
    %v244 = vpop.permute.xlu0 %243
    %246 = vset.pattern.permute.xlu0 1
    %247 = vperm.xlu0 %246, %v39
    %v248 = vpop.permute.xlu0 %247
    %v250 = vmul.f32 %v236, %v182
    %v251 = vmul.f32 %v240, %v183
    %v252 = vmul.f32 %v244, %v184
    %v253 = vmul.f32 %v248, %v185
    %v254 = vadd.f32 %v230, %v250
    %v255 = vadd.f32 %v231, %v251
    %v256 = vadd.f32 %v232, %v252
    %v257 = vadd.f32 %v233, %v253
    %258 = vset.pattern.permute.xlu0 2
    %259 = vperm.xlu0 %258, %v36
    %v260 = vpop.permute.xlu0 %259
    %262 = vset.pattern.permute.xlu0 2
    %263 = vperm.xlu0 %262, %v37
    %v264 = vpop.permute.xlu0 %263
    %266 = vset.pattern.permute.xlu0 2
    %267 = vperm.xlu0 %266, %v38
    %v268 = vpop.permute.xlu0 %267
    %270 = vset.pattern.permute.xlu0 2
    %271 = vperm.xlu0 %270, %v39
    %v272 = vpop.permute.xlu0 %271
    %v274 = vmul.f32 %v260, %v206
    %v275 = vmul.f32 %v264, %v207
    %v276 = vmul.f32 %v268, %v208
    %v277 = vmul.f32 %v272, %v209
    %v278 = vadd.f32 %v254, %v274
    %v279 = vadd.f32 %v255, %v275
    %v280 = vadd.f32 %v256, %v276
    %v281 = vadd.f32 %v257, %v277
    %283 = vset.pattern.permute.xlu0 0
    %284 = vperm.xlu0 %283, %v40
    %v285 = vpop.permute.xlu0 %284
    %288 = vset.pattern.permute.xlu0 0
    %289 = vperm.xlu0 %288, %v41
    %v290 = vpop.permute.xlu0 %289
    %293 = vset.pattern.permute.xlu0 0
    %294 = vperm.xlu0 %293, %v42
    %v295 = vpop.permute.xlu0 %294
    %298 = vset.pattern.permute.xlu0 0
    %299 = vperm.xlu0 %298, %v43
    %v300 = vpop.permute.xlu0 %299
    %v302 = vadd.f32 %v278, %v285
    %v303 = vadd.f32 %v279, %v290
    %v304 = vadd.f32 %v280, %v295
    %v305 = vadd.f32 %v281, %v300
    %307 = vset.pattern.permute.xlu0 0
    %308 = vperm.xlu0 %307, %v45
    %v309 = vpop.permute.xlu0 %308
    %vm311 = vcmask 261120
    %v313 = vsel %vm311, %v44, 0
    %315 = vmatprep.subr.mxu0 0.0
    %316 = vmatpush1.msra.mxu0 %v302
    %317 = vmatprep.subr.mxu0 0.0
    %318 = vmatpush1.msra.mxu0 %v303
    %319 = vmatprep.subr.mxu0 0.0
    %320 = vmatpush1.msra.mxu0 %v304
    %321 = vmatprep.subr.mxu0 0.0
    %322 = vmatpush1.msra.mxu0 %v305
    %323 = vmatprep.subr.mxu0 0.0
    %324 = vmatpush1.msra.mxu0 0.0
    %325 = vmatprep.subr.mxu0 0.0
    %326 = vmatpush1.msra.mxu0 0.0
    %327 = vmatprep.subr.mxu0 0.0
    %328 = vmatpush1.msra.mxu0 0.0
    %329 = vmatprep.subr.mxu0 0.0
    %330 = vmatpush1.msra.mxu0 0.0
    %331 = vmatprep.subr.mxu0 0.0
    %332 = vmatpush1.msra.mxu0 0.0
    %333 = vmatprep.subr.mxu0 0.0
    %334 = vmatpush1.msra.mxu0 0.0
    %335 = vmatprep.subr.mxu0 0.0
    %336 = vmatpush1.msra.mxu0 0.0
    %337 = vmatprep.subr.mxu0 0.0
    %338 = vmatpush1.msra.mxu0 0.0
    %339 = vmatprep.subr.mxu0 0.0
    %340 = vmatpush1.msra.mxu0 0.0
    %341 = vmatprep.subr.mxu0 0.0
    %342 = vmatpush1.msra.mxu0 0.0
    %343 = vmatprep.subr.mxu0 0.0
    %344 = vmatpush1.msra.mxu0 0.0
    %345 = vmatprep.subr.mxu0 0.0
    %346 = vmatpush1.msra.mxu0 0.0
    %347 = vmatprep.subr.mxu0 0.0
    %348 = vmatpush1.msra.mxu0 0.0
    %349 = vmatprep.subr.mxu0 0.0
    %350 = vmatpush1.msra.mxu0 0.0
    %351 = vmatprep.subr.mxu0 0.0
    %352 = vmatpush1.msra.mxu0 0.0
    %353 = vmatprep.subr.mxu0 0.0
    %354 = vmatpush1.msra.mxu0 0.0
    %355 = vmatprep.subr.mxu0 0.0
    %356 = vmatpush1.msra.mxu0 0.0
    %357 = vmatprep.subr.mxu0 0.0
    %358 = vmatpush1.msra.mxu0 0.0
    %359 = vmatprep.subr.mxu0 0.0
    %360 = vmatpush1.msra.mxu0 0.0
    %361 = vmatprep.subr.mxu0 0.0
    %362 = vmatpush1.msra.mxu0 0.0
    %363 = vmatprep.subr.mxu0 0.0
    %364 = vmatpush1.msra.mxu0 0.0
    %365 = vmatprep.subr.mxu0 0.0
    %366 = vmatpush1.msra.mxu0 0.0
    %367 = vmatprep.subr.mxu0 0.0
    %368 = vmatpush1.msra.mxu0 0.0
    %369 = vmatprep.subr.mxu0 0.0
    %370 = vmatpush1.msra.mxu0 0.0
    %371 = vmatprep.subr.mxu0 0.0
    %372 = vmatpush1.msra.mxu0 0.0
    %373 = vmatprep.subr.mxu0 0.0
    %374 = vmatpush1.msra.mxu0 0.0
    %375 = vmatprep.subr.mxu0 0.0
    %376 = vmatpush1.msra.mxu0 0.0
    %377 = vmatprep.subr.mxu0 0.0
    %378 = vmatpush1.msra.mxu0 0.0
    %379 = vmatprep.mubr.f32.mxu0 0.0
    %380 = vmatmul.mubr.f32.gmra.mrb[0].mxu0 %v313
    %v381 = vpop.f32.mrb[0].mxu0
    %v382 = vadd.f32 %v309, %v381
    %v383 = vpop.f32.mrb[0].mxu0
    %384 = vdwg.mxu0
    %v385 = vlaneseq
    %v386 = vshrl.u32 %v385, 7
    %v387 = vsub.s32 4, %v386
    %v388 = vrot.slane %v27, %v387
    %v389 = vmul.f32 %v53, %v388
    %v390 = vmul.f32 %v58, %v388
    %v391 = vmul.f32 %v63, %v388
    %v392 = vmul.f32 %v68, %v388
    %v393 = vadd.f32 %v389, %v81
    %v394 = vadd.f32 %v390, %v86
    %v395 = vadd.f32 %v391, %v91
    %v396 = vadd.f32 %v392, %v96
    %v397 = vlaneseq
    %v398 = vshrl.u32 %v397, 7
    %v399 = vsub.s32 5, %v398
    %v400 = vrot.slane %v27, %v399
    %v401 = vmul.f32 %v104, %v400
    %v402 = vmul.f32 %v108, %v400
    %v403 = vmul.f32 %v112, %v400
    %v404 = vmul.f32 %v116, %v400
    %v405 = vadd.f32 %v393, %v401
    %v406 = vadd.f32 %v394, %v402
    %v407 = vadd.f32 %v395, %v403
    %v408 = vadd.f32 %v396, %v404
    %v409 = vlaneseq
    %v410 = vshrl.u32 %v409, 7
    %v411 = vsub.s32 6, %v410
    %v412 = vrot.slane %v27, %v411
    %v413 = vmul.f32 %v132, %v412
    %v414 = vmul.f32 %v136, %v412
    %v415 = vmul.f32 %v140, %v412
    %v416 = vmul.f32 %v144, %v412
    %v417 = vadd.f32 %v405, %v413
    %v418 = vadd.f32 %v406, %v414
    %v419 = vadd.f32 %v407, %v415
    %v420 = vadd.f32 %v408, %v416
    %v421 = vlaneseq
    %v422 = vshrl.u32 %v421, 7
    %v423 = vsub.s32 7, %v422
    %v424 = vrot.slane %v27, %v423
    %v425 = vmul.f32 %v160, %v424
    %v426 = vmul.f32 %v164, %v424
    %v427 = vmul.f32 %v168, %v424
    %v428 = vmul.f32 %v172, %v424
    %v429 = vadd.f32 %v417, %v425
    %v430 = vadd.f32 %v418, %v426
    %v431 = vadd.f32 %v419, %v427
    %v432 = vadd.f32 %v420, %v428
    %433 = vrot.lane.b32.xlu0 %v429, 1
    %v434 = vpop.permute.xlu0 %433
    %435 = vrot.lane.b32.xlu0 %v430, 1
    %v436 = vpop.permute.xlu0 %435
    %437 = vrot.lane.b32.xlu0 %v431, 1
    %v438 = vpop.permute.xlu0 %437
    %439 = vrot.lane.b32.xlu0 %v432, 1
    %v440 = vpop.permute.xlu0 %439
    %v441 = vsel %vm48, 0.0, %v434
    %v442 = vsel %vm48, 0.0, %v436
    %v443 = vsel %vm48, 0.0, %v438
    %v444 = vsel %vm48, 0.0, %v440
    %445 = vrot.lane.b32.xlu0 %v429, 127
    %v446 = vpop.permute.xlu0 %445
    %447 = vrot.lane.b32.xlu0 %v430, 127
    %v448 = vpop.permute.xlu0 %447
    %449 = vrot.lane.b32.xlu0 %v431, 127
    %v450 = vpop.permute.xlu0 %449
    %451 = vrot.lane.b32.xlu0 %v432, 127
    %v452 = vpop.permute.xlu0 %451
    %v453 = vsel %vm49, 0.0, %v446
    %v454 = vsel %vm49, 0.0, %v448
    %v455 = vsel %vm49, 0.0, %v450
    %v456 = vsel %vm49, 0.0, %v452
    %v457 = vmul.f32 %v213, %v441
    %v458 = vmul.f32 %v218, %v442
    %v459 = vmul.f32 %v223, %v443
    %v460 = vmul.f32 %v228, %v444
    %v461 = vmul.f32 %v236, %v429
    %v462 = vmul.f32 %v240, %v430
    %v463 = vmul.f32 %v244, %v431
    %v464 = vmul.f32 %v248, %v432
    %v465 = vadd.f32 %v457, %v461
    %v466 = vadd.f32 %v458, %v462
    %v467 = vadd.f32 %v459, %v463
    %v468 = vadd.f32 %v460, %v464
    %v469 = vmul.f32 %v260, %v453
    %v470 = vmul.f32 %v264, %v454
    %v471 = vmul.f32 %v268, %v455
    %v472 = vmul.f32 %v272, %v456
    %v473 = vadd.f32 %v465, %v469
    %v474 = vadd.f32 %v466, %v470
    %v475 = vadd.f32 %v467, %v471
    %v476 = vadd.f32 %v468, %v472
    %v477 = vadd.f32 %v473, %v285
    %v478 = vadd.f32 %v474, %v290
    %v479 = vadd.f32 %v475, %v295
    %v480 = vadd.f32 %v476, %v300
    %481 = vmatprep.subr.mxu0 0.0
    %482 = vmatpush1.msra.mxu0 %v477
    %483 = vmatprep.subr.mxu0 0.0
    %484 = vmatpush1.msra.mxu0 %v478
    %485 = vmatprep.subr.mxu0 0.0
    %486 = vmatpush1.msra.mxu0 %v479
    %487 = vmatprep.subr.mxu0 0.0
    %488 = vmatpush1.msra.mxu0 %v480
    %489 = vmatprep.subr.mxu0 0.0
    %490 = vmatpush1.msra.mxu0 0.0
    %491 = vmatprep.subr.mxu0 0.0
    %492 = vmatpush1.msra.mxu0 0.0
    %493 = vmatprep.subr.mxu0 0.0
    %494 = vmatpush1.msra.mxu0 0.0
    %495 = vmatprep.subr.mxu0 0.0
    %496 = vmatpush1.msra.mxu0 0.0
    %497 = vmatprep.subr.mxu0 0.0
    %498 = vmatpush1.msra.mxu0 0.0
    %499 = vmatprep.subr.mxu0 0.0
    %500 = vmatpush1.msra.mxu0 0.0
    %501 = vmatprep.subr.mxu0 0.0
    %502 = vmatpush1.msra.mxu0 0.0
    %503 = vmatprep.subr.mxu0 0.0
    %504 = vmatpush1.msra.mxu0 0.0
    %505 = vmatprep.subr.mxu0 0.0
    %506 = vmatpush1.msra.mxu0 0.0
    %507 = vmatprep.subr.mxu0 0.0
    %508 = vmatpush1.msra.mxu0 0.0
    %509 = vmatprep.subr.mxu0 0.0
    %510 = vmatpush1.msra.mxu0 0.0
    %511 = vmatprep.subr.mxu0 0.0
    %512 = vmatpush1.msra.mxu0 0.0
    %513 = vmatprep.subr.mxu0 0.0
    %514 = vmatpush1.msra.mxu0 0.0
    %515 = vmatprep.subr.mxu0 0.0
    %516 = vmatpush1.msra.mxu0 0.0
    %517 = vmatprep.subr.mxu0 0.0
    %518 = vmatpush1.msra.mxu0 0.0
    %519 = vmatprep.subr.mxu0 0.0
    %520 = vmatpush1.msra.mxu0 0.0
    %521 = vmatprep.subr.mxu0 0.0
    %522 = vmatpush1.msra.mxu0 0.0
    %523 = vmatprep.subr.mxu0 0.0
    %524 = vmatpush1.msra.mxu0 0.0
    %525 = vmatprep.subr.mxu0 0.0
    %526 = vmatpush1.msra.mxu0 0.0
    %527 = vmatprep.subr.mxu0 0.0
    %528 = vmatpush1.msra.mxu0 0.0
    %529 = vmatprep.subr.mxu0 0.0
    %530 = vmatpush1.msra.mxu0 0.0
    %531 = vmatprep.subr.mxu0 0.0
    %532 = vmatpush1.msra.mxu0 0.0
    %533 = vmatprep.subr.mxu0 0.0
    %534 = vmatpush1.msra.mxu0 0.0
    %535 = vmatprep.subr.mxu0 0.0
    %536 = vmatpush1.msra.mxu0 0.0
    %537 = vmatprep.subr.mxu0 0.0
    %538 = vmatpush1.msra.mxu0 0.0
    %539 = vmatprep.subr.mxu0 0.0
    %540 = vmatpush1.msra.mxu0 0.0
    %541 = vmatprep.subr.mxu0 0.0
    %542 = vmatpush1.msra.mxu0 0.0
    %543 = vmatprep.subr.mxu0 0.0
    %544 = vmatpush1.msra.mxu0 0.0
    %545 = vmatprep.mubr.f32.mxu0 0.0
    %546 = vmatmul.mubr.f32.gmra.mrb[0].mxu0 %v313
    %v547 = vpop.f32.mrb[0].mxu0
    %v548 = vadd.f32 %v309, %v547
    %v549 = vpop.f32.mrb[0].mxu0
    %550 = vdwg.mxu0
    %v552 = vrot.slane %v548, 4
    %vm554 = vcmask 1043456
    %v555 = vsel %vm554, %v382, %v552
    %556 = vst [vmem:[#allocation2] sm:$0xff] %v555
    // Predicated region
    $region30: #{tpu_custom_call.1} parent=1 // pred_check
      _
    $region31: #{tpu_custom_call.1} parent=1 // pred_check_branch
      %558 = sbr.rel (0) target = $region33
    $region32: #{tpu_custom_call.1} parent=1 // pred_region
      %s560 = ssub.s32 128, 128
      %561 = vsyncadd [#allocation3], %s560
      %s563 = sshll.u32 [#allocation2], 4
      %s564 = int_to_ptr.vmem [resolvable:$true] %s563
      %566 = dma.vmem_to_hbm [thread:$0]  %s564, 128, %s7, [#allocation3]
    $region33: #{tpu_custom_call.1} parent=1 // pred_fallthru
      _
    // Predicated region
    $region34: #{tpu_custom_call.1} parent=1 // pred_check
      _
    $region35: #{tpu_custom_call.1} parent=1 // pred_check_branch
      %568 = sbr.rel (0) target = $region37
    $region36: #{tpu_custom_call.1} parent=1 // pred_region
      %569 = dma.done [#allocation3], 128
    $region37: #{tpu_custom_call.1} parent=1 // pred_fallthru
      _
    %570 = vsyncpa [#allocation3], 1

</llo_original>
